<compile_context>
chip_gen: v6e
topology: v6e:2x2x1
jax: 0.10.0
libtpu: 0.0.40
codegen_flags: <defaults>
</compile_context>

<pallas_src>
import functools
import math

import jax
import jax.numpy as jnp
from jax import lax
from jax.experimental import pallas as pl
from jax.experimental.pallas import tpu as pltpu

LN_EPS = 1e-5          # RobertaConfig.layer_norm_eps default
INIT_STD = 0.02        # RobertaConfig.initializer_range default
PAD_IDX = 1            # RoBERTa padding_idx


def _pick_tile(dim, cap, aligns):
    """Largest tile <= cap that divides dim and is a multiple of one of `aligns`
    (tried in order); falls back to the full dim (block == array dim is always legal)."""
    if dim <= cap:
        return dim
    for a in aligns:
        if a > cap:
            continue
        t = (cap // a) * a
        while t >= a:
            if dim % t == 0:
                return t
            t -= a
    return dim


def _apply_act(y, activation):
    if activation == "gelu":
        # exact (erf-based) GELU, matching HF hidden_act='gelu'
        return 0.5 * y * (1.0 + lax.erf(y * (1.0 / math.sqrt(2.0))))
    if activation == "tanh":
        return jnp.tanh(y)
    return y


# --------------------------------------------------------------------- tiled linear

def _linear_kernel(x_ref, w_ref, b_ref, o_ref, *maybe_acc, activation, n_k):
    if n_k == 1:
        # Single K step: no accumulator loop, compute + epilogue in one shot.
        y = jnp.dot(x_ref[...], w_ref[...], preferred_element_type=jnp.float32)
        y = _apply_act(y + b_ref[...], activation)
        o_ref[...] = y.astype(o_ref.dtype)
        return

    acc_ref = maybe_acc[0]

    @pl.when(pl.program_id(2) == 0)
    def _():
        acc_ref[...] = jnp.zeros_like(acc_ref)

    acc_ref[...] += jnp.dot(x_ref[...], w_ref[...],
                            preferred_element_type=jnp.float32)

    @pl.when(pl.program_id(2) == n_k - 1)
    def _():
        y = _apply_act(acc_ref[...] + b_ref[...], activation)   # f32 epilogue
        o_ref[...] = y.astype(o_ref.dtype)


def linear(x, w, b, activation="none", out_dtype=jnp.bfloat16):
    """y = act(x @ w + b); bf16 MXU operands, f32 accumulation."""
    if x.dtype != jnp.bfloat16:
        x = x.astype(jnp.bfloat16)
    if w.dtype != jnp.bfloat16:
        w = w.astype(jnp.bfloat16)
    M, K = x.shape
    N = w.shape[1]
    tm = _pick_tile(M, 256, (8,))
    tn = _pick_tile(N, 1024, (256, 128))
    tk = _pick_tile(K, 1024, (256, 128))     # full K (single step) for K <= 1024
    n_k = K // tk
    b2 = b.reshape(1, N).astype(jnp.float32)
    scratch = [] if n_k == 1 else [pltpu.VMEM((tm, tn), jnp.float32)]
    return pl.pallas_call(
        functools.partial(_linear_kernel, activation=activation, n_k=n_k),
        out_shape=jax.ShapeDtypeStruct((M, N), out_dtype),
        grid=(M // tm, N // tn, n_k),
        in_specs=[
            pl.BlockSpec((tm, tk), lambda i, j, k: (i, k)),
            pl.BlockSpec((tk, tn), lambda i, j, k: (k, j)),
            pl.BlockSpec((1, tn), lambda i, j, k: (0, j)),
        ],
        out_specs=pl.BlockSpec((tm, tn), lambda i, j, k: (i, j)),
        scratch_shapes=scratch,
        compiler_params=pltpu.CompilerParams(
            dimension_semantics=("parallel", "parallel", "arbitrary")),
    )(x, w, b2)


# --------------------------------------- linear + residual add + LayerNorm (fused epilogue)

def _linear_res_ln_kernel(x_ref, w_ref, b_ref, r_ref, g_ref, bt_ref, o_ref, *maybe_acc, n_k):
    def finalize(acc):
        y = acc + b_ref[...] + r_ref[...].astype(jnp.float32)     # matmul + bias + residual
        mu = jnp.mean(y, axis=-1, keepdims=True)
        yc = y - mu
        var = jnp.mean(yc * yc, axis=-1, keepdims=True)
        inv = lax.rsqrt(var + LN_EPS)
        o_ref[...] = (yc * inv * g_ref[...] + bt_ref[...]).astype(o_ref.dtype)

    if n_k == 1:
        finalize(jnp.dot(x_ref[...], w_ref[...], preferred_element_type=jnp.float32))
        return

    acc_ref = maybe_acc[0]

    @pl.when(pl.program_id(1) == 0)
    def _():
        acc_ref[...] = jnp.zeros_like(acc_ref)

    acc_ref[...] += jnp.dot(x_ref[...], w_ref[...],
                            preferred_element_type=jnp.float32)

    @pl.when(pl.program_id(1) == n_k - 1)
    def _():
        finalize(acc_ref[...])


def linear_residual_ln(x, w, b, residual, gamma, beta, out_dtype=jnp.bfloat16):
    """LayerNorm(x @ w + b + residual) with the LN fused into the matmul finalize.
    Requires the full output row (tn == N) in one tile; N is the hidden size (<= 1024)."""
    if x.dtype != jnp.bfloat16:
        x = x.astype(jnp.bfloat16)
    if w.dtype != jnp.bfloat16:
        w = w.astype(jnp.bfloat16)
    M, K = x.shape
    N = w.shape[1]
    tm = _pick_tile(M, 256, (8,))
    tk = _pick_tile(K, 1024, (256, 128))
    n_k = K // tk
    b2 = b.reshape(1, N).astype(jnp.float32)
    g2 = gamma.reshape(1, N).astype(jnp.float32)
    bt2 = beta.reshape(1, N).astype(jnp.float32)
    row_spec = pl.BlockSpec((tm, N), lambda i, k: (i, 0))
    vec_spec = pl.BlockSpec((1, N), lambda i, k: (0, 0))
    scratch = [] if n_k == 1 else [pltpu.VMEM((tm, N), jnp.float32)]
    return pl.pallas_call(
        functools.partial(_linear_res_ln_kernel, n_k=n_k),
        out_shape=jax.ShapeDtypeStruct((M, N), out_dtype),
        grid=(M // tm, n_k),
        in_specs=[
            pl.BlockSpec((tm, tk), lambda i, k: (i, k)),
            pl.BlockSpec((tk, N), lambda i, k: (k, 0)),
            vec_spec,
            row_spec,          # residual
            vec_spec,          # gamma
            vec_spec,          # beta
        ],
        out_specs=row_spec,
        scratch_shapes=scratch,
        compiler_params=pltpu.CompilerParams(
            dimension_semantics=("parallel", "arbitrary")),
    )(x, w, b2, residual, g2, bt2)


# ------------------------------------------------------------- layernorm (embeddings only)

def _ln_kernel(x_ref, g_ref, b_ref, o_ref):
    x = x_ref[...].astype(jnp.float32)
    mu = jnp.mean(x, axis=-1, keepdims=True)
    xc = x - mu
    var = jnp.mean(xc * xc, axis=-1, keepdims=True)
    inv = lax.rsqrt(var + LN_EPS)
    o_ref[...] = (xc * inv * g_ref[...] + b_ref[...]).astype(o_ref.dtype)


def layernorm(x, gamma, beta, out_dtype=jnp.bfloat16):
    M, N = x.shape
    tr = _pick_tile(M, 512, (8,))
    row_spec = pl.BlockSpec((tr, N), lambda i: (i, 0))
    vec_spec = pl.BlockSpec((1, N), lambda i: (0, 0))
    return pl.pallas_call(
        _ln_kernel,
        out_shape=jax.ShapeDtypeStruct((M, N), out_dtype),
        grid=(M // tr,),
        in_specs=[row_spec, vec_spec, vec_spec],
        out_specs=row_spec,
        compiler_params=pltpu.CompilerParams(dimension_semantics=("parallel",)),
    )(x, gamma.reshape(1, N).astype(jnp.float32), beta.reshape(1, N).astype(jnp.float32))


# ------------------------------------------------------------------------- attention

def _attention_kernel(q_ref, kv_ref, o_ref, *, n_heads):
    """q_ref: (1, tq, 3H) block of qkv (only Q columns used; 1/sqrt(Dh) already folded
    into the Q projection weights).  kv_ref: (1, S, 3H), resident across q blocks.
    Each head's (tq, Dh) context is written directly into its column slice of the
    (1, tq, H) VMEM output block — no concatenate, live ranges bounded per head."""
    H3 = kv_ref.shape[-1]
    H = H3 // 3
    Dh = H // n_heads
    for h in range(n_heads):
        q = q_ref[0, :, h * Dh:(h + 1) * Dh]                       # (tq, Dh) bf16
        k = kv_ref[0, :, H + h * Dh:H + (h + 1) * Dh]              # (S, Dh)  bf16
        v = kv_ref[0, :, 2 * H + h * Dh:2 * H + (h + 1) * Dh]      # (S, Dh)  bf16
        # QK^T without materializing k.T: contract over the Dh axis directly.
        s = lax.dot_general(q, k, (((1,), (1,)), ((), ())),
                            preferred_element_type=jnp.float32)    # (tq, S) f32
        s = s - jnp.max(s, axis=-1, keepdims=True)
        p = jnp.exp(s)
        inv = pl.reciprocal(jnp.sum(p, axis=-1, keepdims=True), approx=True)
        ctx = jnp.dot(p.astype(jnp.bfloat16), v,
                      preferred_element_type=jnp.float32) * inv    # (tq, Dh) f32
        o_ref[0, :, h * Dh:(h + 1) * Dh] = ctx.astype(o_ref.dtype)


def attention(qkv, n_heads):
    """qkv: (B, S, 3H) bf16 -> (B, S, H) bf16.  Grid is (batch, q-row blocks): both axes
    parallel so v7x's two TensorCores are busy even at batch 1-2; K/V block index is
    constant across the q axis so it stays resident in VMEM."""
    B, S, H3 = qkv.shape
    H = H3 // 3
    tq = _pick_tile(S, 256, (8,))
    return pl.pallas_call(
        functools.partial(_attention_kernel, n_heads=n_heads),
        out_shape=jax.ShapeDtypeStruct((B, S, H), jnp.bfloat16),
        grid=(B, S // tq),
        in_specs=[
            pl.BlockSpec((1, tq, H3), lambda b, qi: (b, qi, 0)),   # Q rows (blocked)
            pl.BlockSpec((1, S, H3), lambda b, qi: (b, 0, 0)),     # K/V (full, resident)
        ],
        out_specs=pl.BlockSpec((1, tq, H), lambda b, qi: (b, qi, 0)),
        compiler_params=pltpu.CompilerParams(
            dimension_semantics=("parallel", "parallel")),
    )(qkv, qkv)


# ------------------------------------------------------------------------ parameters

def init_params(key, *, vocab, hidden, n_layers, n_heads, inter, max_pos, n_classes):
    def nrm(k, shape):
        return jax.random.normal(k, shape, jnp.float32) * INIT_STD

    d_head = hidden // n_heads
    scale = 1.0 / math.sqrt(d_head)

    keys = jax.random.split(key, 4 + n_layers)
    p = {
        "word_emb": nrm(keys[0], (vocab, hidden)).at[PAD_IDX].set(0.0),
        "pos_emb": nrm(keys[1], (max_pos, hidden)).at[PAD_IDX].set(0.0),
        "tok_emb": nrm(keys[2], (1, hidden)),
        "emb_ln_g": jnp.ones((hidden,), jnp.float32),
        "emb_ln_b": jnp.zeros((hidden,), jnp.float32),
    }
    layers = []
    for li in range(n_layers):
        lk = jax.random.split(keys[3 + li], 6)
        # 1/sqrt(Dh) attention scale folded into the Q projection (weights AND bias).
        wq = nrm(lk[0], (hidden, hidden)) * scale
        wk = nrm(lk[1], (hidden, hidden))
        wv = nrm(lk[2], (hidden, hidden))
        bq = jnp.zeros((hidden,), jnp.float32) * scale
        layers.append({
            # fused QKV projection weight (H, 3H); matmul weights stored bf16
            "w_qkv": jnp.concatenate([wq, wk, wv], axis=1).astype(jnp.bfloat16),
            "b_qkv": jnp.concatenate([bq,
                                      jnp.zeros((hidden,), jnp.float32),
                                      jnp.zeros((hidden,), jnp.float32)]),
            "wo": nrm(lk[3], (hidden, hidden)).astype(jnp.bfloat16),
            "bo": jnp.zeros((hidden,), jnp.float32),
            "attn_ln_g": jnp.ones((hidden,), jnp.float32),
            "attn_ln_b": jnp.zeros((hidden,), jnp.float32),
            "wi": nrm(lk[4], (hidden, inter)).astype(jnp.bfloat16),
            "bi": jnp.zeros((inter,), jnp.float32),
            "wo2": nrm(lk[5], (inter, hidden)).astype(jnp.bfloat16),
            "bo2": jnp.zeros((hidden,), jnp.float32),
            "out_ln_g": jnp.ones((hidden,), jnp.float32),
            "out_ln_b": jnp.zeros((hidden,), jnp.float32),
        })
    p["layers"] = layers
    ck = jax.random.split(keys[3 + n_layers], 2)
    p["cls_w"] = nrm(ck[0], (hidden, hidden))
    p["cls_b"] = jnp.zeros((hidden,), jnp.float32)
    p["out_w"] = nrm(ck[1], (hidden, n_classes))
    p["out_b"] = jnp.zeros((n_classes,), jnp.float32)
    p["n_heads"] = n_heads
    return p


# --------------------------------------------------------------------------- forward

def roberta_forward(params, input_ids):
    """input_ids: (B, S) int32 -> logits: (B, num_classes) float32."""
    B, S = input_ids.shape
    H = params["word_emb"].shape[1]
    n_heads = params["n_heads"]

    # --- embeddings (RoBERTa position ids: cumsum over non-pad tokens + pad_idx)
    mask = (input_ids != PAD_IDX).astype(jnp.int32)
    position_ids = jnp.cumsum(mask, axis=1) * mask + PAD_IDX
    emb = (params["word_emb"][input_ids]
           + params["pos_emb"][position_ids]
           + params["tok_emb"][jnp.zeros_like(input_ids)])
    h = layernorm(emb.reshape(B * S, H), params["emb_ln_g"], params["emb_ln_b"])   # bf16

    # --- encoder layers (dropout = identity, eval mode)
    for lp in params["layers"]:
        qkv = linear(h, lp["w_qkv"], lp["b_qkv"], out_dtype=jnp.bfloat16)          # (B*S, 3H)
        ctx = attention(qkv.reshape(B, S, 3 * H), n_heads)                         # (B, S, H)
        # attention output projection + residual + LayerNorm, fused in one kernel
        h = linear_residual_ln(ctx.reshape(B * S, H), lp["wo"], lp["bo"],
                               h, lp["attn_ln_g"], lp["attn_ln_b"])
        ffn = linear(h, lp["wi"], lp["bi"], activation="gelu", out_dtype=jnp.bfloat16)
        # FFN down-projection + residual + LayerNorm, fused in one kernel
        h = linear_residual_ln(ffn, lp["wo2"], lp["bo2"],
                               h, lp["out_ln_g"], lp["out_ln_b"])

    # --- classification head: <s> token, dense+tanh, out_proj.
    # Tiny (B, H)/(B, n_classes) matmuls: left to XLA (per-pallas_call overhead > compute).
    pooled = h.reshape(B, S, H)[:, 0, :].astype(jnp.float32)                       # (B, H)
    x = jnp.tanh(pooled @ params["cls_w"] + params["cls_b"])
    logits = x @ params["out_w"] + params["out_b"]
    return logits


# ------------------------------------------------------------------------------ main

if __name__ == "__main__":
    # Small config consistent with the module's constructor arguments (hidden a multiple
    # of 128 so the demo exercises lane-dense stores; real target is RoBERTa-base shapes).
    B, S = 2, 16
    VOCAB = 128
    HIDDEN = 128
    N_LAYERS = 2
    N_HEADS = 4
    INTER = 256
    MAX_POS = 64
    NUM_CLASSES = 3

    key = jax.random.PRNGKey(0)
    pkey, dkey = jax.random.split(key)
    params = init_params(pkey, vocab=VOCAB, hidden=HIDDEN, n_layers=N_LAYERS,
                         n_heads=N_HEADS, inter=INTER, max_pos=MAX_POS,
                         n_classes=NUM_CLASSES)

    input_ids = jax.random.randint(dkey, (B, S), 0, VOCAB, dtype=jnp.int32)

    logits = roberta_forward(params, input_ids)
    logits = jax.block_until_ready(logits)
    assert logits.shape == (B, NUM_CLASSES)
    assert bool(jnp.all(jnp.isfinite(logits)))
    print("KERNEL_OK")
</pallas_src>

<mosaic_0001>
module attributes {stable_mosaic.version = 11 : i64} {
  func.func @_ln_kernel(%arg0: i32, %arg1: memref<32x128xf32, #tpu.memory_space<vmem>>, %arg2: memref<1x128xf32, #tpu.memory_space<vmem>>, %arg3: memref<1x128xf32, #tpu.memory_space<vmem>>, %arg4: memref<32x128xbf16, #tpu.memory_space<vmem>>) attributes {dimension_semantics = [#tpu.dimension_semantics<parallel>], iteration_bounds = array<i64: 1>, scalar_prefetch = 0 : i64, scratch_operands = 0 : i64, tpu.core_type = #tpu.core_type<tc>, window_params = [{transform_indices = @transform_0, window_bounds = array<i64: 32, 128>}, {pipeline_mode = #tpu.pipeline_mode<synchronous>, transform_indices = @transform_1, window_bounds = array<i64: 1, 128>}, {pipeline_mode = #tpu.pipeline_mode<synchronous>, transform_indices = @transform_2, window_bounds = array<i64: 1, 128>}, {transform_indices = @transform_3, window_bounds = array<i64: 32, 128>}]} {
    %c0 = arith.constant 0 : index
    %c0_0 = arith.constant 0 : index
    %0 = vector.load %arg1[%c0, %c0_0] : memref<32x128xf32, #tpu.memory_space<vmem>>, vector<32x128xf32>
    %cst = arith.constant dense<0.000000e+00> : vector<32xf32>
    %1 = vector.multi_reduction <add>, %0, %cst [1] : vector<32x128xf32> to vector<32xf32>
    %2 = vector.shape_cast %1 : vector<32xf32> to vector<32x1xf32>
    %cst_1 = arith.constant 1.280000e+02 : f32
    %3 = vector.broadcast %cst_1 : f32 to vector<32x1xf32>
    %4 = arith.divf %2, %3 : vector<32x1xf32>
    %5 = vector.broadcast %4 : vector<32x1xf32> to vector<32x128xf32>
    %6 = arith.subf %0, %5 : vector<32x128xf32>
    %7 = arith.mulf %6, %6 : vector<32x128xf32>
    %cst_2 = arith.constant dense<0.000000e+00> : vector<32xf32>
    %8 = vector.multi_reduction <add>, %7, %cst_2 [1] : vector<32x128xf32> to vector<32xf32>
    %9 = vector.shape_cast %8 : vector<32xf32> to vector<32x1xf32>
    %cst_3 = arith.constant 1.280000e+02 : f32
    %10 = vector.broadcast %cst_3 : f32 to vector<32x1xf32>
    %11 = arith.divf %9, %10 : vector<32x1xf32>
    %cst_4 = arith.constant 9.99999974E-6 : f32
    %12 = vector.broadcast %cst_4 : f32 to vector<32x1xf32>
    %13 = arith.addf %11, %12 : vector<32x1xf32>
    %14 = math.rsqrt %13 : vector<32x1xf32>
    %15 = vector.broadcast %14 : vector<32x1xf32> to vector<32x128xf32>
    %16 = arith.mulf %6, %15 : vector<32x128xf32>
    %c0_5 = arith.constant 0 : index
    %c0_6 = arith.constant 0 : index
    %17 = vector.load %arg2[%c0_5, %c0_6] : memref<1x128xf32, #tpu.memory_space<vmem>>, vector<1x128xf32>
    %18 = vector.broadcast %17 : vector<1x128xf32> to vector<32x128xf32>
    %19 = arith.mulf %16, %18 : vector<32x128xf32>
    %c0_7 = arith.constant 0 : index
    %c0_8 = arith.constant 0 : index
    %20 = vector.load %arg3[%c0_7, %c0_8] : memref<1x128xf32, #tpu.memory_space<vmem>>, vector<1x128xf32>
    %21 = vector.broadcast %20 : vector<1x128xf32> to vector<32x128xf32>
    %22 = arith.addf %19, %21 : vector<32x128xf32>
    %23 = arith.truncf %22 : vector<32x128xf32> to vector<32x128xbf16>
    %c0_9 = arith.constant 0 : index
    %c0_10 = arith.constant 0 : index
    %24 = vector.load %arg4[%c0_9, %c0_10] : memref<32x128xbf16, #tpu.memory_space<vmem>>, vector<32x128xbf16>
    tpu.vector_store %arg4[%c0_9, %c0_10], %23 {strides = array<i32>} : memref<32x128xbf16, #tpu.memory_space<vmem>>, vector<32x128xbf16>,
    return
  }
  func.func @transform_0(%arg0: i32) -> (i32, i32) {
    %c0_i32 = arith.constant 0 : i32
    %c0_i32_0 = arith.constant 0 : i32
    return %arg0, %c0_i32 : i32, i32
  }
  func.func @transform_1(%arg0: i32) -> (i32, i32) {
    %c0_i32 = arith.constant 0 : i32
    %c0_i32_0 = arith.constant 0 : i32
    %c0_i32_1 = arith.constant 0 : i32
    return %c0_i32, %c0_i32_0 : i32, i32
  }
  func.func @transform_2(%arg0: i32) -> (i32, i32) {
    %c0_i32 = arith.constant 0 : i32
    %c0_i32_0 = arith.constant 0 : i32
    %c0_i32_1 = arith.constant 0 : i32
    return %c0_i32, %c0_i32_0 : i32, i32
  }
  func.func @transform_3(%arg0: i32) -> (i32, i32) {
    %c0_i32 = arith.constant 0 : i32
    %c0_i32_0 = arith.constant 0 : i32
    return %arg0, %c0_i32 : i32, i32
  }
}

</mosaic_0001>

<llo_original>
// kernel: tpu_custom_call.1
$region0: #{tpu_custom_call.1}
  #allocation0 [shape = 'u32[]', space=smem, size = 0x4, offset = 0x4, fixed_abs, tag = 'smem constant byte address 0x4 - core index']
  #allocation1 [shape = 'u32[144,128]{1,0:T(1,128)}', space=vmem, size = 0x12000, scoped, tag = 'internal scratch']
  %s0 = inlined_call_operand.hbm [shape: f32[32,128], index: 0, kind: input, shape index: {}]
  %s1 = inlined_call_operand.vmem [shape: f32[1,128], index: 1, kind: input, shape index: {}]
  %s2 = inlined_call_operand.vmem [shape: f32[1,128], index: 2, kind: input, shape index: {}]
  %s3 = inlined_call_operand.hbm [shape: bf16[32,128], index: 3, kind: output, shape index: {}]
  %s4 = sld [smem:[#allocation0]]
  $region26: #{tpu_custom_call.1} parent=0
    _
  %s6 = ssub.s32 1, %s4
  %s7 = scalar_select 0, %s6, %s4
  $region1: #{tpu_custom_call.1} parent=0
    #allocation2 [shape = 'u8[16384]{0}', space=vmem, size = 0x4000, scoped, tag = 'input window, operand 0, single buffered']
    #allocation3 [shape = 's32[1]{0}', space=sflag, size = 0x4, scoped, tag = 'scoped memory for tpu_custom_call.1']
    #allocation4 [shape = 's32[1]{0}', space=sflag, size = 0x4, scoped, tag = 'scoped memory for tpu_custom_call.1']
    #allocation5 [shape = 'u8[8192]{0}', space=vmem, size = 0x2000, scoped, tag = 'output window, operand 0, single buffered']
    %8 = vsyncpa [#allocation3], 0
    %9 = vsyncpa [#allocation4], 0
    // Predicated region
    $region2: #{tpu_custom_call.1} parent=1 // pred_check
      _
    $region3: #{tpu_custom_call.1} parent=1 // pred_check_branch
      %11 = sbr.rel (0) target = $region5
    $region4: #{tpu_custom_call.1} parent=1 // pred_region
      %s13 = ssub.s32 512, 512
      %14 = vsyncadd [#allocation3], %s13
      %s15 = sshll.u32 [#allocation2], 4
      %s16 = int_to_ptr.vmem [resolvable:$true] %s15
      %21 = dma.hbm_to_vmem [thread:$0]  %s0, 512, %s16, [#allocation3], 128, 128, 8
    $region5: #{tpu_custom_call.1} parent=1 // pred_fallthru
      _
    // Predicated region
    $region6: #{tpu_custom_call.1} parent=1 // pred_check
      _
    $region7: #{tpu_custom_call.1} parent=1 // pred_check_branch
      %23 = sbr.rel (0) target = $region9
    $region8: #{tpu_custom_call.1} parent=1 // pred_region
      _
    $region9: #{tpu_custom_call.1} parent=1 // pred_fallthru
      _
    // Predicated region
    $region10: #{tpu_custom_call.1} parent=1 // pred_check
      _
    $region11: #{tpu_custom_call.1} parent=1 // pred_check_branch
      %25 = sbr.rel (0) target = $region13
    $region12: #{tpu_custom_call.1} parent=1 // pred_region
      _
    $region13: #{tpu_custom_call.1} parent=1 // pred_fallthru
      _
    // Predicated region
    $region14: #{tpu_custom_call.1} parent=1 // pred_check
      _
    $region15: #{tpu_custom_call.1} parent=1 // pred_check_branch
      %27 = sbr.rel (0) target = $region17
    $region16: #{tpu_custom_call.1} parent=1 // pred_region
      %28 = dma.done [#allocation3], 512
    $region17: #{tpu_custom_call.1} parent=1 // pred_fallthru
      _
    %v29 = vld [vmem:[#allocation2] sm:$0xff]
    %v30 = vld [vmem:[#allocation2 + $0x8] sm:$0xff]
    %v31 = vld [vmem:[#allocation2 + $0x10] sm:$0xff]
    %v32 = vld [vmem:[#allocation2 + $0x18] sm:$0xff]
    %33 = vadd.xlane.f32.xlu0 %v29
    %v34 = vpop.xlane.xlu0 %33
    %35 = vadd.xlane.f32.xlu0 %v30
    %v36 = vpop.xlane.xlu0 %35
    %37 = vadd.xlane.f32.xlu0 %v31
    %v38 = vpop.xlane.xlu0 %37
    %39 = vadd.xlane.f32.xlu0 %v32
    %v40 = vpop.xlane.xlu0 %39
    %v41 = vrcp.pop 128.0
    %v42 = vmul.f32 %v34, %v41
    %v43 = vmul.f32 %v36, %v41
    %v44 = vmul.f32 %v38, %v41
    %v45 = vmul.f32 %v40, %v41
    %v46 = vsub.f32 %v29, %v42
    %v47 = vsub.f32 %v30, %v43
    %v48 = vsub.f32 %v31, %v44
    %v49 = vsub.f32 %v32, %v45
    %v50 = vmul.f32 %v46, %v46
    %v51 = vmul.f32 %v47, %v47
    %v52 = vmul.f32 %v48, %v48
    %v53 = vmul.f32 %v49, %v49
    %54 = vadd.xlane.f32.xlu0 %v50
    %v55 = vpop.xlane.xlu0 %54
    %56 = vadd.xlane.f32.xlu0 %v51
    %v57 = vpop.xlane.xlu0 %56
    %58 = vadd.xlane.f32.xlu0 %v52
    %v59 = vpop.xlane.xlu0 %58
    %60 = vadd.xlane.f32.xlu0 %v53
    %v61 = vpop.xlane.xlu0 %60
    %v62 = vmul.f32 %v55, %v41
    %v63 = vmul.f32 %v57, %v41
    %v64 = vmul.f32 %v59, %v41
    %v65 = vmul.f32 %v61, %v41
    %v66 = vadd.f32 %v62, 1e-05
    %v67 = vadd.f32 %v63, 1e-05
    %v68 = vadd.f32 %v64, 1e-05
    %v69 = vadd.f32 %v65, 1e-05
    %v70 = vrsqrt.pop %v66
    %v71 = vrsqrt.pop %v67
    %v72 = vrsqrt.pop %v68
    %v73 = vrsqrt.pop %v69
    %v74 = vmul.f32 %v46, %v70
    %v75 = vmul.f32 %v47, %v71
    %v76 = vmul.f32 %v48, %v72
    %v77 = vmul.f32 %v49, %v73
    %v78 = vld [vmem:[%s1] sm:$0x1]
    %v80 = vlaneseq
    %v81 = vshrl.u32 %v80, 7
    %v82 = vsub.s32 0, %v81
    %v83 = vrot.slane %v78, %v82
    %v85 = vmul.f32 %v74, %v83
    %v86 = vmul.f32 %v75, %v83
    %v87 = vmul.f32 %v76, %v83
    %v88 = vmul.f32 %v77, %v83
    %v89 = vld [vmem:[%s2] sm:$0x1]
    %v91 = vlaneseq
    %v92 = vshrl.u32 %v91, 7
    %v93 = vsub.s32 0, %v92
    %v94 = vrot.slane %v89, %v93
    %v96 = vadd.f32 %v85, %v94
    %v97 = vadd.f32 %v86, %v94
    %v98 = vadd.f32 %v87, %v94
    %v99 = vadd.f32 %v88, %v94
    %v100 = vpack.c.bf16 %v97, %v96
    %v101 = vpack.c.bf16 %v99, %v98
    %v104 = vunpack.c.l.b16 %v100
    %v105 = vunpack.c.h.b16 %v100
    %v106 = vunpack.c.l.b16 %v101
    %v107 = vunpack.c.h.b16 %v101
    %v108 = vpack.c.b16 %v104, %v104
    %v109 = vpack.c.b16 %v105, %v105
    %v110 = vpack.c.b16 %v106, %v106
    %v111 = vpack.c.b16 %v107, %v107
    %116 = vst [vmem:[#allocation5] sm:$0xf] %v108
    %117 = vst [vmem:[#allocation5 + $0x4] sm:$0xf] %v109
    %118 = vst [vmem:[#allocation5 + $0x8] sm:$0xf] %v110
    %119 = vst [vmem:[#allocation5 + $0xc] sm:$0xf] %v111
    // Predicated region
    $region18: #{tpu_custom_call.1} parent=1 // pred_check
      _
    $region19: #{tpu_custom_call.1} parent=1 // pred_check_branch
      %121 = sbr.rel (0) target = $region21
    $region20: #{tpu_custom_call.1} parent=1 // pred_region
      %s123 = ssub.s32 256, 256
      %124 = vsyncadd [#allocation4], %s123
      %s125 = sshll.u32 [#allocation5], 4
      %s126 = int_to_ptr.vmem [resolvable:$true] %s125
      %131 = dma.vmem_to_hbm [thread:$0]  %s126, 256, %s3, [#allocation4], 64, 64, 4
    $region21: #{tpu_custom_call.1} parent=1 // pred_fallthru
      _
    // Predicated region
    $region22: #{tpu_custom_call.1} parent=1 // pred_check
      _
    $region23: #{tpu_custom_call.1} parent=1 // pred_check_branch
      %133 = sbr.rel (0) target = $region25
    $region24: #{tpu_custom_call.1} parent=1 // pred_region
      %134 = dma.done [#allocation4], 256
    $region25: #{tpu_custom_call.1} parent=1 // pred_fallthru
      _
    %135 = vsyncpa [#allocation3], 1
    %136 = vsyncpa [#allocation4], 1

</llo_original>
